<compile_context>
chip_gen: v7x
topology: tpu7x:2x2x1
jax: 0.10.0
libtpu: 0.0.40
codegen_flags: <defaults>
</compile_context>

<pallas_src>
import functools
import numpy as np
import jax
import jax.numpy as jnp
from jax.experimental import pallas as pl
from jax.experimental.pallas import tpu as pltpu


def _plane_source_kernel(mult_ref, inner_ref, re_ref, im_ref, *, k_scale):
    """One grid step = one wavelength channel x one lane-dense row tile.

    mult_ref : SMEM (C,)       f32  -- 2*pi*ref_idx/lamb0 (scalar prefetch)
    inner_ref: VMEM (TH, L)    f32  -- dir_x*x + dir_y*y (channel-invariant,
                                       block index constant over the channel
                                       sweep -> stays resident, no re-DMA)
    re_ref   : VMEM (1, TH, L) f32
    im_ref   : VMEM (1, TH, L) f32
    """
    c = pl.program_id(1)                      # channel = fastest grid axis
    phase = mult_ref[c] * inner_ref[...]      # scalar (SMEM) x vector
    # TODO(synk): if Mosaic expands sin/cos into VPU polynomial sequences the
    #             kernel can go VALU-bound on v7x; a shared range reduction for
    #             the sin/cos pair is not expressible portably from jnp today.
    re_ref[0, :, :] = k_scale * jnp.cos(phase)
    im_ref[0, :, :] = k_scale * jnp.sin(phase)


def _lane_dense_layout(H, W):
    """Pick a lane-dense (rows, lanes) factorization of the H*W plane."""
    if W % 128 == 0:
        return H, W
    total = H * W
    if total % 128 == 0:
        L = 128
        while total % (2 * L) == 0 and 2 * L <= 32768:
            L *= 2
        return total // L, L
    # Fallback: masked partial stores (odd W < 128 etc.).
    return H, W


def plane_source(x_grid, y_grid, lamb0, *, amplitude, ref_idx, power,
                 dir_factors, return_planar=False):
    """Returns the source field as a (1, C, H, W) complex64 array
    (or planar (re, im) f32 pair if return_planar=True)."""
    H, W = x_grid.shape
    C = int(lamb0.shape[0])

    # ---- glue: direction-factor normalization (host scalars; config consts) --
    # NOTE: concretizes dir_factors; do not jit plane_source with traced dirs.
    if dir_factors is not None:
        d = np.asarray(dir_factors, dtype=np.float64)
        n = float(np.sqrt((d * d).sum()))
        if n != 0.0:
            dx, dy = float(d[0] / n), float(d[1] / n)
        else:
            dx, dy = 0.0, 0.0
    else:
        dx, dy = 0.0, 0.0

    # ---- analytic power normalization: |exp(i*phase)| == 1 -------------------
    #   field_power == amplitude^2 * H * W  =>  scale = sqrt(power / field_power)
    k_scale = float(amplitude) * float(
        np.sqrt(power / (amplitude * amplitude * H * W)))

    # ---- early-out: normal incidence -> phase == 0 -> constant field ---------
    if dx == 0.0 and dy == 0.0:
        if return_planar:
            return (jnp.full((1, C, H, W), k_scale, jnp.float32),
                    jnp.zeros((1, C, H, W), jnp.float32))
        return jnp.full((1, C, H, W), complex(k_scale, 0.0), jnp.complex64)

    # ---- channel-invariant inner product, computed ONCE (dead terms dropped) -
    if dy == 0.0:
        inner = dx * x_grid.astype(jnp.float32)
    elif dx == 0.0:
        inner = dy * y_grid.astype(jnp.float32)
    else:
        inner = (dx * x_grid.astype(jnp.float32)
                 + dy * y_grid.astype(jnp.float32))

    # ---- per-channel phase multiplier 2*pi*n/lambda ---------------------------
    # NOTE: phase is evaluated in f32; for very large grids / short wavelengths
    # (|phase| >> 2*pi) f32 argument reduction drifts from an f64 reference.
    mult = jnp.asarray(
        (2.0 * np.pi * ref_idx / np.asarray(lamb0, np.float64)).astype(np.float32))

    # ---- lane-dense flattening (elementwise op => relayout is free) ----------
    R, L = _lane_dense_layout(H, W)
    inner = inner.reshape(R, L)

    # ---- row tiling: ~4 MiB f32 blocks ---------------------------------------
    # 3 live arrays (inner + re + im) x 2 buffers ~= 24 MiB peak < 48 MiB limit.
    plane_budget = 4 * 1024 * 1024
    if R * L * 4 <= plane_budget:
        th = R
    else:
        th = max(8, (plane_budget // (4 * L)) // 8 * 8)
        th = min(th, R)
    n_h = pl.cdiv(R, th)

    kernel = functools.partial(_plane_source_kernel, k_scale=k_scale)

    grid_spec = pltpu.PrefetchScalarGridSpec(
        num_scalar_prefetch=1,                       # mult -> SMEM
        grid=(n_h, C),                               # channels fastest: inner
                                                     # block index unchanged ->
                                                     # re-DMA skipped per step
        in_specs=[
            pl.BlockSpec((th, L), lambda hi, ci, mult_ref: (hi, 0)),          # inner
        ],
        out_specs=[
            pl.BlockSpec((1, th, L), lambda hi, ci, mult_ref: (ci, hi, 0)),   # real
            pl.BlockSpec((1, th, L), lambda hi, ci, mult_ref: (ci, hi, 0)),   # imag
        ],
    )

    re, im = pl.pallas_call(
        kernel,
        grid_spec=grid_spec,
        out_shape=(
            jax.ShapeDtypeStruct((C, R, L), jnp.float32),
            jax.ShapeDtypeStruct((C, R, L), jnp.float32),
        ),
        compiler_params=pltpu.CompilerParams(
            dimension_semantics=("parallel", "parallel"),
            vmem_limit_bytes=48 * 1024 * 1024,
        ),
    )(mult, inner)

    re = re.reshape(1, C, H, W)
    im = im.reshape(1, C, H, W)
    if return_planar:
        return re, im
    # See TODO(synk) at top: this contiguous-read assembly pass is the cheapest
    # legal way to obtain complex64 from a Mosaic kernel.
    return jax.lax.complex(re, im)


def _reference_numpy(x_grid, y_grid, lamb0, amplitude, ref_idx, power, dir_factors):
    d = np.asarray(dir_factors, dtype=np.float64)
    n = np.sqrt((d ** 2).sum())
    if n != 0:
        dx, dy, dz = d / n
    else:
        dx, dy, dz = 0.0, 0.0, 1.0
    inner = dx * x_grid[None, None, :, :] + dy * y_grid[None, None, :, :]
    mult = 2.0 * np.pi * ref_idx / lamb0[None, :, None, None]
    phase = mult * inner
    f = amplitude * np.exp(1j * phase)
    fp = (np.abs(f) ** 2).sum(axis=(-2, -1), keepdims=True)
    return (f * np.sqrt(power / fp)).astype(np.complex64)


if __name__ == "__main__":
    # small, module-consistent shapes: C=4 wavelengths, H=16, W=128 spatial grid
    C, H, W = 4, 16, 128

    key = jax.random.PRNGKey(0)
    k1, _ = jax.random.split(key)

    lamb0 = jax.random.uniform(k1, (C,), dtype=jnp.float32, minval=0.4, maxval=0.7)
    xs = jnp.linspace(-1.0, 1.0, H, dtype=jnp.float32)
    ys = jnp.linspace(-1.0, 1.0, W, dtype=jnp.float32)
    x_grid, y_grid = jnp.meshgrid(xs, ys, indexing="ij")          # (H, W) each

    amplitude = 1.5
    ref_idx = 1.45
    power = 2.0
    dir_factors = jnp.asarray([1.0, 2.0, 2.0], dtype=jnp.float32)

    field = plane_source(
        x_grid, y_grid, lamb0,
        amplitude=amplitude, ref_idx=ref_idx, power=power, dir_factors=dir_factors,
    )
    field = jax.block_until_ready(field)

    ref = _reference_numpy(
        np.asarray(x_grid, dtype=np.float64),
        np.asarray(y_grid, dtype=np.float64),
        np.asarray(lamb0, dtype=np.float64),
        amplitude, ref_idx, power, np.asarray(dir_factors),
    )

    assert field.shape == (1, C, H, W) and field.dtype == jnp.complex64
    np.testing.assert_allclose(np.asarray(field), ref, rtol=2e-4, atol=2e-4)
    print("KERNEL_OK")
</pallas_src>

<mosaic_0001>
module attributes {stable_mosaic.version = 11 : i64} {
  func.func @_plane_source_kernel(%arg0: i32, %arg1: i32, %arg2: memref<4xf32, #tpu.memory_space<smem>>, %arg3: memref<16x128xf32, #tpu.memory_space<vmem>>, %arg4: memref<1x16x128xf32, #tpu.memory_space<vmem>>, %arg5: memref<1x16x128xf32, #tpu.memory_space<vmem>>) attributes {dimension_semantics = [#tpu.dimension_semantics<parallel>, #tpu.dimension_semantics<parallel>], iteration_bounds = array<i64: 1, 4>, scalar_prefetch = 1 : i64, scratch_operands = 0 : i64, tpu.core_type = #tpu.core_type<tc>, window_params = [{transform_indices = @transform_0, window_bounds = array<i64: 16, 128>}, {transform_indices = @transform_1, window_bounds = array<i64: 1, 16, 128>}, {transform_indices = @transform_2, window_bounds = array<i64: 1, 16, 128>}]} {
    %0 = arith.index_cast %arg1 : i32 to index
    %1 = memref.load %arg2[%0] : memref<4xf32, #tpu.memory_space<smem>>
    %c0 = arith.constant 0 : index
    %c0_0 = arith.constant 0 : index
    %2 = vector.load %arg3[%c0, %c0_0] : memref<16x128xf32, #tpu.memory_space<vmem>>, vector<16x128xf32>
    %3 = vector.broadcast %1 : f32 to vector<16x128xf32>
    %4 = arith.mulf %3, %2 : vector<16x128xf32>
    %5 = math.cos %4 : vector<16x128xf32>
    %cst = arith.constant 3.125000e-02 : f32
    %6 = vector.broadcast %cst : f32 to vector<16x128xf32>
    %7 = arith.mulf %6, %5 : vector<16x128xf32>
    %c0_1 = arith.constant 0 : index
    %c0_2 = arith.constant 0 : index
    %c0_3 = arith.constant 0 : index
    %8 = vector.load %arg4[%c0_1, %c0_2, %c0_3] : memref<1x16x128xf32, #tpu.memory_space<vmem>>, vector<1x16x128xf32>
    %9 = vector.shape_cast %8 : vector<1x16x128xf32> to vector<16x128xf32>
    %10 = vector.shape_cast %7 : vector<16x128xf32> to vector<1x16x128xf32>
    tpu.vector_store %arg4[%c0_1, %c0_2, %c0_3], %10 {strides = array<i32>} : memref<1x16x128xf32, #tpu.memory_space<vmem>>, vector<1x16x128xf32>,
    %11 = math.sin %4 : vector<16x128xf32>
    %cst_4 = arith.constant 3.125000e-02 : f32
    %12 = vector.broadcast %cst_4 : f32 to vector<16x128xf32>
    %13 = arith.mulf %12, %11 : vector<16x128xf32>
    %c0_5 = arith.constant 0 : index
    %c0_6 = arith.constant 0 : index
    %c0_7 = arith.constant 0 : index
    %14 = vector.load %arg5[%c0_5, %c0_6, %c0_7] : memref<1x16x128xf32, #tpu.memory_space<vmem>>, vector<1x16x128xf32>
    %15 = vector.shape_cast %14 : vector<1x16x128xf32> to vector<16x128xf32>
    %16 = vector.shape_cast %13 : vector<16x128xf32> to vector<1x16x128xf32>
    tpu.vector_store %arg5[%c0_5, %c0_6, %c0_7], %16 {strides = array<i32>} : memref<1x16x128xf32, #tpu.memory_space<vmem>>, vector<1x16x128xf32>,
    return
  }
  func.func @transform_0(%arg0: i32, %arg1: i32, %arg2: memref<4xf32, #tpu.memory_space<smem>>) -> (i32, i32) {
    %c0_i32 = arith.constant 0 : i32
    %c0_i32_0 = arith.constant 0 : i32
    return %arg0, %c0_i32 : i32, i32
  }
  func.func @transform_1(%arg0: i32, %arg1: i32, %arg2: memref<4xf32, #tpu.memory_space<smem>>) -> (i32, i32, i32) {
    %c0_i32 = arith.constant 0 : i32
    %c0_i32_0 = arith.constant 0 : i32
    return %arg1, %arg0, %c0_i32 : i32, i32, i32
  }
  func.func @transform_2(%arg0: i32, %arg1: i32, %arg2: memref<4xf32, #tpu.memory_space<smem>>) -> (i32, i32, i32) {
    %c0_i32 = arith.constant 0 : i32
    %c0_i32_0 = arith.constant 0 : i32
    return %arg1, %arg0, %c0_i32 : i32, i32, i32
  }
}

</mosaic_0001>

<llo_original>
// kernel: tpu_custom_call.1
$region0: #{tpu_custom_call.1}
  #allocation0 [shape = 'u32[]', space=smem, size = 0x4, offset = 0x4, fixed_abs, tag = 'smem constant byte address 0x4 - core index']
  #allocation1 [shape = 'u32[144,128]{1,0:T(1,128)}', space=vmem, size = 0x12000, scoped, tag = 'internal scratch']
  #allocation2 [shape = 's32[1]{0}', space=sflag, size = 0x4, scoped, tag = 'scoped memory for tpu_custom_call.1']
  #allocation3 [shape = 'u8[512]{0}', space=smem, size = 0x200, scoped, tag = 'prefetched SMEM operand 0']
  %s0 = inlined_call_operand.hbm [shape: f32[4], index: 0, kind: input, shape index: {}]
  %s1 = inlined_call_operand.hbm [shape: f32[16,128], index: 1, kind: input, shape index: {}]
  %s2 = inlined_call_operand.hbm [shape: f32[4,16,128], index: 2, kind: output, shape index: {0}]
  %s3 = inlined_call_operand.hbm [shape: f32[4,16,128], index: 3, kind: output, shape index: {1}]
  %4 = xla_tuple %s2, %s3
  %s5 = sld [smem:[#allocation0]]
  $region49: #{tpu_custom_call.1} parent=0
    _
  %s7 = ssub.s32 1, %s5
  %s8 = scalar_select 0, %s7, %s5
  %10 = dma.hbm_to_smem %s0, 16, [#allocation3], [#allocation2]
  %11 = dma.done [#allocation2], 16
  %12 = sfence
  $region1: #{tpu_custom_call.1} parent=0
    #allocation4 [shape = 'u8[8192]{0}', space=vmem, size = 0x2000, scoped, tag = 'input window, operand 1, single buffered']
    #allocation5 [shape = 's32[2]{0}', space=sflag, size = 0x8, scoped, tag = 'scoped memory for tpu_custom_call.1']
    #allocation6 [shape = 's32[2]{0}', space=sflag, size = 0x8, scoped, tag = 'scoped memory for tpu_custom_call.1']
    #allocation7 [shape = 'u8[16384]{0}', space=vmem, size = 0x4000, scoped, tag = 'output window, operand 0']
    #allocation8 [shape = 'u8[16384]{0}', space=vmem, size = 0x4000, scoped, tag = 'output window, operand 1']
    #allocation9 [shape = 's32[2]{0}', space=sflag, size = 0x8, scoped, tag = 'scoped memory for tpu_custom_call.1']
    %13 = vsyncpa [#allocation5], 0
    %14 = vsyncpa [#allocation6], 0
    %s15 = scalar_lea.sflag [#allocation6], 1
    %16 = vsyncpa %s15, 0
    %17 = vsyncpa [#allocation9], 0
    %s18 = scalar_lea.sflag [#allocation9], 1
    %19 = vsyncpa %s18, 0
    loop: start=0, step=1, limit=6
    $region2: #{tpu_custom_call.1} parent=1 // loop_pre_header
      _
    $region3: #{tpu_custom_call.1} parent=1 // loop_header
      %s21 = sphi 0, %s25
      %p22 = scmp.ge.s32.totalorder %s21, 6
      %s28 = sphi 0, %s40
      %s29 = sphi 0, %s36
      %s30 = sphi 0, %s28
      %s31 = sphi 0, %s29
      %s32 = sphi 0, %s30
      %s33 = sphi 0, %s31
      %s43 = sphi 0, %s45
      %s46 = sphi 0, %s43
      %s47 = sphi 0, %s46
      %s63 = sphi 0, %s47
      %s71 = sphi 0, %s73
      %s74 = sphi 0, %s71
      %s75 = sphi 0, %s74
      %s91 = sphi 0, %s75
      %s99 = sphi 0, %s101
      %s102 = sphi 0, %s99
      %s103 = sphi 0, %s102
      %s119 = sphi 0, %s103
    $region4: #{tpu_custom_call.1} parent=1 // loop_header_branch
      %24 = sbr.rel (%p22) target = $region8
    $region5: #{tpu_custom_call.1} parent=1 // loop_body
      %s26 = ssub.s32 %s21, 1
      %s27 = ssub.s32 %s21, 2
      %s34 = sadd.s32 1, %s29
      %p35 = scmp.ge.s32.totalorder %s34, 4
      %s36 = scalar_select %p35, 0, %s34
      %s37 = sadd.s32 1, %s28
      %s38 = scalar_select %p35, %s37, %s28
      %p39 = scmp.ge.s32.totalorder %s38, 1
      %s40 = scalar_select %p39, 0, %s38
      %s41 = ssub.s32 %s28, %s40
      %p42 = scmp.eq.s32.totalorder %s41, 0
      %s44 = sadd.s32 %s43, 1
      %s45 = scalar_select %p42, %s43, %s44
      %p48 = pneg %p42
      %p49 = scmp.eq.s32.totalorder %s21, 3
      %p50 = por %p48, %p49
      %p51 = scmp.ne.s32.totalorder %s43, %s46
      %p52 = scmp.eq.s32.totalorder %s21, 0
      %p53 = por %p51, %p52
      %p54 = scmp.ne.s32.totalorder %s43, %s46
      %p55 = scmp.eq.s32.totalorder %s26, 3
      %p56 = por %p54, %p55
      %p57 = scmp.ne.s32.totalorder %s46, %s47
      %p58 = scmp.eq.s32.totalorder %s26, 0
      %p59 = por %p57, %p58
      %p60 = scmp.ne.s32.totalorder %s46, %s47
      %p61 = scmp.eq.s32.totalorder %s27, 3
      %p62 = por %p60, %p61
      %p64 = scmp.ne.s32.totalorder %s47, %s63
      %p65 = scmp.eq.s32.totalorder %s27, 0
      %p66 = por %p64, %p65
      %s67 = ssub.s32 %s29, %s36
      %s68 = ssub.s32 %s28, %s40
      %s69 = sor.u32 %s67, %s68
      %p70 = scmp.eq.s32.totalorder %s69, 0
      %s72 = sadd.s32 %s71, 1
      %s73 = scalar_select %p70, %s71, %s72
      %p76 = pneg %p70
      %p77 = scmp.eq.s32.totalorder %s21, 3
      %p78 = por %p76, %p77
      %p79 = scmp.ne.s32.totalorder %s71, %s74
      %p80 = scmp.eq.s32.totalorder %s21, 0
      %p81 = por %p79, %p80
      %p82 = scmp.ne.s32.totalorder %s71, %s74
      %p83 = scmp.eq.s32.totalorder %s26, 3
      %p84 = por %p82, %p83
      %p85 = scmp.ne.s32.totalorder %s74, %s75
      %p86 = scmp.eq.s32.totalorder %s26, 0
      %p87 = por %p85, %p86
      %p88 = scmp.ne.s32.totalorder %s74, %s75
      %p89 = scmp.eq.s32.totalorder %s27, 3
      %p90 = por %p88, %p89
      %p92 = scmp.ne.s32.totalorder %s75, %s91
      %p93 = scmp.eq.s32.totalorder %s27, 0
      %p94 = por %p92, %p93
      %s95 = ssub.s32 %s29, %s36
      %s96 = ssub.s32 %s28, %s40
      %s97 = sor.u32 %s95, %s96
      %p98 = scmp.eq.s32.totalorder %s97, 0
      %s100 = sadd.s32 %s99, 1
      %s101 = scalar_select %p98, %s99, %s100
      %p104 = pneg %p98
      %p105 = scmp.eq.s32.totalorder %s21, 3
      %p106 = por %p104, %p105
      %p107 = scmp.ne.s32.totalorder %s99, %s102
      %p108 = scmp.eq.s32.totalorder %s21, 0
      %p109 = por %p107, %p108
      %p110 = scmp.ne.s32.totalorder %s99, %s102
      %p111 = scmp.eq.s32.totalorder %s26, 3
      %p112 = por %p110, %p111
      %p113 = scmp.ne.s32.totalorder %s102, %s103
      %p114 = scmp.eq.s32.totalorder %s26, 0
      %p115 = por %p113, %p114
      %p116 = scmp.ne.s32.totalorder %s102, %s103
      %p117 = scmp.eq.s32.totalorder %s27, 3
      %p118 = por %p116, %p117
      %p120 = scmp.ne.s32.totalorder %s103, %s119
      %p121 = scmp.eq.s32.totalorder %s27, 0
      %p122 = por %p120, %p121
      %p123 = scmp.le.s32.totalorder 1, %s21
      %p124 = scmp.lt.s32.totalorder %s21, 5
      %p125 = pnand %p123, %p124
      %p126 = pneg %p125
      // Predicated region
      $region9: #{tpu_custom_call.1} parent=5 // pred_check
        _
      $region10: #{tpu_custom_call.1} parent=5 // pred_check_branch
        %128 = sbr.rel (%p125) target = $region12
      $region11: #{tpu_custom_call.1} parent=5 // pred_region
        %s129 = ssub.s32 %s21, 1
        // Predicated region
        $region13: #{tpu_custom_call.1} parent=11 // pred_check
          %p130 = pneg %p59
        $region14: #{tpu_custom_call.1} parent=11 // pred_check_branch
          %132 = sbr.rel (%p130) target = $region16
        $region15: #{tpu_custom_call.1} parent=11 // pred_region
          %s133 = smul.u32 2, %s30
          %s135 = ssub.s32 256, 256
          %136 = vsyncadd [#allocation5], %s135
          %s137 = smul.addr %s133, 128
          %s138 = scalar_lea.hbm %s1, %s137
          %s139 = sshll.u32 [#allocation4], 4
          %s140 = int_to_ptr.vmem [resolvable:$true] %s139
          %145 = dma.hbm_to_vmem [thread:$0]  %s138, 256, %s140, [#allocation5], 128, 128, 8
        $region16: #{tpu_custom_call.1} parent=11 // pred_fallthru
          _
      $region12: #{tpu_custom_call.1} parent=5 // pred_fallthru
        _
      %p146 = scmp.lt.s32.totalorder %s21, 4
      // Predicated region
      $region17: #{tpu_custom_call.1} parent=5 // pred_check
        %p147 = pneg %p146
      $region18: #{tpu_custom_call.1} parent=5 // pred_check_branch
        %149 = sbr.rel (%p147) target = $region20
      $region19: #{tpu_custom_call.1} parent=5 // pred_region
        _
      $region20: #{tpu_custom_call.1} parent=5 // pred_fallthru
        _
      %p150 = scmp.le.s32.totalorder 1, %s21
      %p151 = scmp.lt.s32.totalorder %s21, 5
      %p152 = pnand %p150, %p151
      %p153 = pneg %p152
      // Predicated region
      $region21: #{tpu_custom_call.1} parent=5 // pred_check
        _
      $region22: #{tpu_custom_call.1} parent=5 // pred_check_branch
        %155 = sbr.rel (%p152) target = $region24
      $region23: #{tpu_custom_call.1} parent=5 // pred_region
        %s156 = ssub.s32 %s21, 1
        // Predicated region
        $region25: #{tpu_custom_call.1} parent=23 // pred_check
          %p157 = pneg %p59
        $region26: #{tpu_custom_call.1} parent=23 // pred_check_branch
          %159 = sbr.rel (%p157) target = $region28
        $region27: #{tpu_custom_call.1} parent=23 // pred_region
          %160 = dma.done [#allocation5], 256
        $region28: #{tpu_custom_call.1} parent=23 // pred_fallthru
          _
        %p161 = pneg %p59
        %p162 = pneg %p56
        %p163 = pneg %p87
        %p164 = pneg %p84
        %s165 = sand.u32 %s74, 1
        %s166 = scalar_lea.sflag [#allocation6], %s165
        %s167 = sand.u32 %s74, 1
        %s168 = smul.addr %s167, 16
        %s169 = scalar_lea.vmem [#allocation7], %s168
        %p170 = pneg %p115
        %p171 = pneg %p112
        %s172 = sand.u32 %s102, 1
        %s173 = scalar_lea.sflag [#allocation9], %s172
        %s174 = sand.u32 %s102, 1
        %s175 = smul.addr %s174, 16
        %s176 = scalar_lea.vmem [#allocation8], %s175
        %s177 = smul.u32 2, %s30
        %s178 = smul.u32 2, %s30
        %s179 = smul.u32 2, %s30
        %s180 = sld [smem:[#allocation3 + %s31]]
        %v181 = vld [vmem:[#allocation4] sm:$0xff]
        %v182 = vld [vmem:[#allocation4 + $0x8] sm:$0xff]
        %v183 = vstv %s180
        %v184 = vmul.f32 %v183, %v181
        %v185 = vmul.f32 %v183, %v182
        %v186 = vand.u32 2147483647, %v184
        %vm187 = vcmp.le.f32.partialorder %v186, 0.7853982
        %vm188 = vcmp.lt.s32.totalorder %v184, 0
        %v189 = vand.u32 %v184, 2139095040
        %v190 = vshrl.u32 %v189, 23
        %v191 = vsub.s32 %v190, 127
        %v192 = vand.u32 2147483647, %v184
        %v193 = vand.u32 %v192, 8388607
        %v194 = vor.u32 %v193, 8388608
        %v195 = vsub.s32 0, %v194
        %v196 = vadd.s32 %v191, 1
        %vm197 = vcmp.gt.s32.totalorder %v196, 0
        %v198 = vsel %vm197, %v196, 0
        %v199 = vshrl.u32 %v198, 5
        %v200 = vand.u32 %v198, 31
        %v201 = vsub.s32 32, %v200
        %v202 = vshrl.u32 683565275, %v201
        %v203 = vshll.u32 683565275, %v200
        %v204 = vshrl.u32 2475754826, %v201
        %v205 = vor.u32 %v203, %v204
        %v206 = vshll.u32 2475754826, %v200
        %v207 = vshrl.u32 2131351028, %v201
        %v208 = vor.u32 %v206, %v207
        %v209 = vshll.u32 2131351028, %v200
        %v210 = vshrl.u32 2102212464, %v201
        %v211 = vor.u32 %v209, %v210
        %v212 = vshll.u32 2102212464, %v200
        %v213 = vshrl.u32 920167782, %v201
        %v214 = vor.u32 %v212, %v213
        %v215 = vshll.u32 920167782, %v200
        %v216 = vshrl.u32 1326507024, %v201
        %v217 = vor.u32 %v215, %v216
        %vm218 = vcmp.lt.s32.totalorder %v199, 1
        %vm219 = vcmp.lt.s32.totalorder %v199, 2
        %vm220 = vcmp.lt.s32.totalorder %v199, 3
        %vm221 = vcmp.lt.s32.totalorder %v199, 4
        %v222 = vsel %vm218, %v202, %v205
        %v223 = vsel %vm221, %v211, 2102212464
        %v224 = vsel %vm220, %v208, %v223
        %v225 = vsel %vm219, %v222, %v224
        %v226 = vsel %vm218, %v205, %v208
        %v227 = vsel %vm221, %v214, 920167782
        %v228 = vsel %vm220, %v211, %v227
        %v229 = vsel %vm219, %v226, %v228
        %v230 = vsel %vm218, %v208, %v211
        %v231 = vsel %vm221, %v217, 1326507024
        %v232 = vsel %vm220, %v214, %v231
        %v233 = vsel %vm219, %v230, %v232
        %v234 = vshll.u32 %v194, 8
        %v235 = vmul.u32.u64.compose %v234, %v233
        %v236 = vextract.low.u32 %v235
        %v237 = vextract.high.u32 %v235
        %v238 = vmul.u32.u64.compose %v234, %v229
        %v239 = vextract.low.u32 %v238
        %v240 = vextract.high.u32 %v238
        %v241 = vmul.u32 %v234, %v225
        %v242 = vadd.s32 %v237, %v239
        %vm243 = vc.u32 %v237, %v239
        %v244 = vadd.s32 %v240, 1
        %v245 = vsel %vm243, %v244, %v240
        %v246 = vadd.s32 %v241, %v245
        %v247 = vadd.s32 %v246, 536870912
        %v248 = vshrl.u32 %v247, 30
        %v249 = vshll.u32 %v248, 30
        %v250 = vsub.s32 %v246, %v249
        %vm251 = vcmp.lt.s32.totalorder %v250, 0
        %v252 = vsub.s32 0, %v250
        %v253 = vsel %vm251, %v252, %v250
        %v254 = vclz %v253
        %v255 = vsub.s32 %v254, 2
        %vm256 = vcmp.gt.s32.totalorder 0, %v255
        %v257 = vsel %vm256, 0, %v255
        %v258 = vsub.s32 32, %v257
        %v259 = vshll.u32 %v250, %v257
        %v260 = vshrl.u32 %v242, %v258
        %v261 = vor.u32 %v259, %v260
        %v262 = vsub.s32 4294967266, %v257
        %v263 = vadd.s32 %v262, 127
        %v264 = vshll.u32 %v263, 23
        %v265 = vor.u32 4788187, %v264
        %v266 = vand.u32 2147483647, %v265
        %v268 = vcvt.s32.f32 %v261
        %v269 = vmul.f32 %v268, %v266
        %v270 = vxor.u32 %v269, 2147483648
        %v271 = vsel %vm188, %v270, %v269
        %v272 = vsub.s32 4, %v248
        %v273 = vsel %vm188, %v272, %v248
        %v274 = vsel %vm187, %v184, %v271
        %v275 = vsel %vm187, 0, %v273
        %v276 = vcosq.f32.pop %v274
        %v277 = vsinq.f32.pop %v274
        %vm278 = vweird.f32 %v184
        %v279 = vand.u32 %v275, 3
        %vm280 = vcmp.lt.s32.totalorder %v279, 2
        %vm281 = vcmp.eq.s32.totalorder %v279, 0
        %v282 = vxor.u32 %v277, 2147483648
        %v283 = vsel %vm281, %v276, %v282
        %vm284 = vcmp.eq.s32.totalorder %v279, 2
        %v285 = vxor.u32 %v276, 2147483648
        %v286 = vsel %vm284, %v285, %v277
        %v287 = vsel %vm280, %v283, %v286
        %v288 = vsel %vm278, nan, %v287
        %v289 = vand.u32 2147483647, %v185
        %vm290 = vcmp.le.f32.partialorder %v289, 0.7853982
        %vm291 = vcmp.lt.s32.totalorder %v185, 0
        %v292 = vand.u32 %v185, 2139095040
        %v293 = vshrl.u32 %v292, 23
        %v294 = vsub.s32 %v293, 127
        %v295 = vand.u32 2147483647, %v185
        %v296 = vand.u32 %v295, 8388607
        %v297 = vor.u32 %v296, 8388608
        %v298 = vsub.s32 0, %v297
        %v299 = vadd.s32 %v294, 1
        %vm300 = vcmp.gt.s32.totalorder %v299, 0
        %v301 = vsel %vm300, %v299, 0
        %v302 = vshrl.u32 %v301, 5
        %v303 = vand.u32 %v301, 31
        %v304 = vsub.s32 32, %v303
        %v305 = vshrl.u32 683565275, %v304
        %v306 = vshll.u32 683565275, %v303
        %v307 = vshrl.u32 2475754826, %v304
        %v308 = vor.u32 %v306, %v307
        %v309 = vshll.u32 2475754826, %v303
        %v310 = vshrl.u32 2131351028, %v304
        %v311 = vor.u32 %v309, %v310
        %v312 = vshll.u32 2131351028, %v303
        %v313 = vshrl.u32 2102212464, %v304
        %v314 = vor.u32 %v312, %v313
        %v315 = vshll.u32 2102212464, %v303
        %v316 = vshrl.u32 920167782, %v304
        %v317 = vor.u32 %v315, %v316
        %v318 = vshll.u32 920167782, %v303
        %v319 = vshrl.u32 1326507024, %v304
        %v320 = vor.u32 %v318, %v319
        %vm321 = vcmp.lt.s32.totalorder %v302, 1
        %vm322 = vcmp.lt.s32.totalorder %v302, 2
        %vm323 = vcmp.lt.s32.totalorder %v302, 3
        %vm324 = vcmp.lt.s32.totalorder %v302, 4
        %v325 = vsel %vm321, %v305, %v308
        %v326 = vsel %vm324, %v314, 2102212464
        %v327 = vsel %vm323, %v311, %v326
        %v328 = vsel %vm322, %v325, %v327
        %v329 = vsel %vm321, %v308, %v311
        %v330 = vsel %vm324, %v317, 920167782
        %v331 = vsel %vm323, %v314, %v330
        %v332 = vsel %vm322, %v329, %v331
        %v333 = vsel %vm321, %v311, %v314
        %v334 = vsel %vm324, %v320, 1326507024
        %v335 = vsel %vm323, %v317, %v334
        %v336 = vsel %vm322, %v333, %v335
        %v337 = vshll.u32 %v297, 8
        %v338 = vmul.u32.u64.compose %v337, %v336
        %v339 = vextract.low.u32 %v338
        %v340 = vextract.high.u32 %v338
        %v341 = vmul.u32.u64.compose %v337, %v332
        %v342 = vextract.low.u32 %v341
        %v343 = vextract.high.u32 %v341
        %v344 = vmul.u32 %v337, %v328
        %v345 = vadd.s32 %v340, %v342
        %vm346 = vc.u32 %v340, %v342
        %v347 = vadd.s32 %v343, 1
        %v348 = vsel %vm346, %v347, %v343
        %v349 = vadd.s32 %v344, %v348
        %v350 = vadd.s32 %v349, 536870912
        %v351 = vshrl.u32 %v350, 30
        %v352 = vshll.u32 %v351, 30
        %v353 = vsub.s32 %v349, %v352
        %vm354 = vcmp.lt.s32.totalorder %v353, 0
        %v355 = vsub.s32 0, %v353
        %v356 = vsel %vm354, %v355, %v353
        %v357 = vclz %v356
        %v358 = vsub.s32 %v357, 2
        %vm359 = vcmp.gt.s32.totalorder 0, %v358
        %v360 = vsel %vm359, 0, %v358
        %v361 = vsub.s32 32, %v360
        %v362 = vshll.u32 %v353, %v360
        %v363 = vshrl.u32 %v345, %v361
        %v364 = vor.u32 %v362, %v363
        %v365 = vsub.s32 4294967266, %v360
        %v366 = vadd.s32 %v365, 127
        %v367 = vshll.u32 %v366, 23
        %v368 = vor.u32 4788187, %v367
        %v369 = vand.u32 2147483647, %v368
        %v371 = vcvt.s32.f32 %v364
        %v372 = vmul.f32 %v371, %v369
        %v373 = vxor.u32 %v372, 2147483648
        %v374 = vsel %vm291, %v373, %v372
        %v375 = vsub.s32 4, %v351
        %v376 = vsel %vm291, %v375, %v351
        %v377 = vsel %vm290, %v185, %v374
        %v378 = vsel %vm290, 0, %v376
        %v379 = vcosq.f32.pop %v377
        %v380 = vsinq.f32.pop %v377
        %vm381 = vweird.f32 %v185
        %v382 = vand.u32 %v378, 3
        %vm383 = vcmp.lt.s32.totalorder %v382, 2
        %vm384 = vcmp.eq.s32.totalorder %v382, 0
        %v385 = vxor.u32 %v380, 2147483648
        %v386 = vsel %vm384, %v379, %v385
        %vm387 = vcmp.eq.s32.totalorder %v382, 2
        %v388 = vxor.u32 %v379, 2147483648
        %v389 = vsel %vm387, %v388, %v380
        %v390 = vsel %vm383, %v386, %v389
        %v391 = vsel %vm381, nan, %v390
        %v392 = vmul.f32 %v288, 0.03125
        %v393 = vmul.f32 %v391, 0.03125
        %394 = vst [vmem:[%s169] sm:$0xff] %v392
        %395 = vst [vmem:[%s169 + $0x8] sm:$0xff] %v393
        %v396 = vand.u32 2147483647, %v184
        %vm397 = vcmp.le.f32.partialorder %v396, 0.7853982
        %vm398 = vcmp.lt.s32.totalorder %v184, 0
        %v399 = vand.u32 %v184, 2139095040
        %v400 = vshrl.u32 %v399, 23
        %v401 = vsub.s32 %v400, 127
        %v402 = vand.u32 2147483647, %v184
        %v403 = vand.u32 %v402, 8388607
        %v404 = vor.u32 %v403, 8388608
        %v405 = vsub.s32 0, %v404
        %v406 = vadd.s32 %v401, 1
        %vm407 = vcmp.gt.s32.totalorder %v406, 0
        %v408 = vsel %vm407, %v406, 0
        %v409 = vshrl.u32 %v408, 5
        %v410 = vand.u32 %v408, 31
        %v411 = vsub.s32 32, %v410
        %v412 = vshrl.u32 683565275, %v411
        %v413 = vshll.u32 683565275, %v410
        %v414 = vshrl.u32 2475754826, %v411
        %v415 = vor.u32 %v413, %v414
        %v416 = vshll.u32 2475754826, %v410
        %v417 = vshrl.u32 2131351028, %v411
        %v418 = vor.u32 %v416, %v417
        %v419 = vshll.u32 2131351028, %v410
        %v420 = vshrl.u32 2102212464, %v411
        %v421 = vor.u32 %v419, %v420
        %v422 = vshll.u32 2102212464, %v410
        %v423 = vshrl.u32 920167782, %v411
        %v424 = vor.u32 %v422, %v423
        %v425 = vshll.u32 920167782, %v410
        %v426 = vshrl.u32 1326507024, %v411
        %v427 = vor.u32 %v425, %v426
        %vm428 = vcmp.lt.s32.totalorder %v409, 1
        %vm429 = vcmp.lt.s32.totalorder %v409, 2
        %vm430 = vcmp.lt.s32.totalorder %v409, 3
        %vm431 = vcmp.lt.s32.totalorder %v409, 4
        %v432 = vsel %vm428, %v412, %v415
        %v433 = vsel %vm431, %v421, 2102212464
        %v434 = vsel %vm430, %v418, %v433
        %v435 = vsel %vm429, %v432, %v434
        %v436 = vsel %vm428, %v415, %v418
        %v437 = vsel %vm431, %v424, 920167782
        %v438 = vsel %vm430, %v421, %v437
        %v439 = vsel %vm429, %v436, %v438
        %v440 = vsel %vm428, %v418, %v421
        %v441 = vsel %vm431, %v427, 1326507024
        %v442 = vsel %vm430, %v424, %v441
        %v443 = vsel %vm429, %v440, %v442
        %v444 = vshll.u32 %v404, 8
        %v445 = vmul.u32.u64.compose %v444, %v443
        %v446 = vextract.low.u32 %v445
        %v447 = vextract.high.u32 %v445
        %v448 = vmul.u32.u64.compose %v444, %v439
        %v449 = vextract.low.u32 %v448
        %v450 = vextract.high.u32 %v448
        %v451 = vmul.u32 %v444, %v435
        %v452 = vadd.s32 %v447, %v449
        %vm453 = vc.u32 %v447, %v449
        %v454 = vadd.s32 %v450, 1
        %v455 = vsel %vm453, %v454, %v450
        %v456 = vadd.s32 %v451, %v455
        %v457 = vadd.s32 %v456, 536870912
        %v458 = vshrl.u32 %v457, 30
        %v459 = vshll.u32 %v458, 30
        %v460 = vsub.s32 %v456, %v459
        %vm461 = vcmp.lt.s32.totalorder %v460, 0
        %v462 = vsub.s32 0, %v460
        %v463 = vsel %vm461, %v462, %v460
        %v464 = vclz %v463
        %v465 = vsub.s32 %v464, 2
        %vm466 = vcmp.gt.s32.totalorder 0, %v465
        %v467 = vsel %vm466, 0, %v465
        %v468 = vsub.s32 32, %v467
        %v469 = vshll.u32 %v460, %v467
        %v470 = vshrl.u32 %v452, %v468
        %v471 = vor.u32 %v469, %v470
        %v472 = vsub.s32 4294967266, %v467
        %v473 = vadd.s32 %v472, 127
        %v474 = vshll.u32 %v473, 23
        %v475 = vor.u32 4788187, %v474
        %v476 = vand.u32 2147483647, %v475
        %v478 = vcvt.s32.f32 %v471
        %v479 = vmul.f32 %v478, %v476
        %v480 = vxor.u32 %v479, 2147483648
        %v481 = vsel %vm398, %v480, %v479
        %v482 = vsub.s32 4, %v458
        %v483 = vsel %vm398, %v482, %v458
        %v484 = vsel %vm397, %v184, %v481
        %v485 = vsel %vm397, 0, %v483
        %v486 = vcosq.f32.pop %v484
        %v487 = vsinq.f32.pop %v484
        %vm488 = vweird.f32 %v184
        %v489 = vadd.s32 %v485, 3
        %v490 = vand.u32 %v489, 3
        %vm491 = vcmp.lt.s32.totalorder %v490, 2
        %vm492 = vcmp.eq.s32.totalorder %v490, 0
        %v493 = vxor.u32 %v487, 2147483648
        %v494 = vsel %vm492, %v486, %v493
        %vm495 = vcmp.eq.s32.totalorder %v490, 2
        %v496 = vxor.u32 %v486, 2147483648
        %v497 = vsel %vm495, %v496, %v487
        %v498 = vsel %vm491, %v494, %v497
        %v499 = vsel %vm488, nan, %v498
        %v500 = vand.u32 2147483647, %v185
        %vm501 = vcmp.le.f32.partialorder %v500, 0.7853982
        %vm502 = vcmp.lt.s32.totalorder %v185, 0
        %v503 = vand.u32 %v185, 2139095040
        %v504 = vshrl.u32 %v503, 23
        %v505 = vsub.s32 %v504, 127
        %v506 = vand.u32 2147483647, %v185
        %v507 = vand.u32 %v506, 8388607
        %v508 = vor.u32 %v507, 8388608
        %v509 = vsub.s32 0, %v508
        %v510 = vadd.s32 %v505, 1
        %vm511 = vcmp.gt.s32.totalorder %v510, 0
        %v512 = vsel %vm511, %v510, 0
        %v513 = vshrl.u32 %v512, 5
        %v514 = vand.u32 %v512, 31
        %v515 = vsub.s32 32, %v514
        %v516 = vshrl.u32 683565275, %v515
        %v517 = vshll.u32 683565275, %v514
        %v518 = vshrl.u32 2475754826, %v515
        %v519 = vor.u32 %v517, %v518
        %v520 = vshll.u32 2475754826, %v514
        %v521 = vshrl.u32 2131351028, %v515
        %v522 = vor.u32 %v520, %v521
        %v523 = vshll.u32 2131351028, %v514
        %v524 = vshrl.u32 2102212464, %v515
        %v525 = vor.u32 %v523, %v524
        %v526 = vshll.u32 2102212464, %v514
        %v527 = vshrl.u32 920167782, %v515
        %v528 = vor.u32 %v526, %v527
        %v529 = vshll.u32 920167782, %v514
        %v530 = vshrl.u32 1326507024, %v515
        %v531 = vor.u32 %v529, %v530
        %vm532 = vcmp.lt.s32.totalorder %v513, 1
        %vm533 = vcmp.lt.s32.totalorder %v513, 2
        %vm534 = vcmp.lt.s32.totalorder %v513, 3
        %vm535 = vcmp.lt.s32.totalorder %v513, 4
        %v536 = vsel %vm532, %v516, %v519
        %v537 = vsel %vm535, %v525, 2102212464
        %v538 = vsel %vm534, %v522, %v537
        %v539 = vsel %vm533, %v536, %v538
        %v540 = vsel %vm532, %v519, %v522
        %v541 = vsel %vm535, %v528, 920167782
        %v542 = vsel %vm534, %v525, %v541
        %v543 = vsel %vm533, %v540, %v542
        %v544 = vsel %vm532, %v522, %v525
        %v545 = vsel %vm535, %v531, 1326507024
        %v546 = vsel %vm534, %v528, %v545
        %v547 = vsel %vm533, %v544, %v546
        %v548 = vshll.u32 %v508, 8
        %v549 = vmul.u32.u64.compose %v548, %v547
        %v550 = vextract.low.u32 %v549
        %v551 = vextract.high.u32 %v549
        %v552 = vmul.u32.u64.compose %v548, %v543
        %v553 = vextract.low.u32 %v552
        %v554 = vextract.high.u32 %v552
        %v555 = vmul.u32 %v548, %v539
        %v556 = vadd.s32 %v551, %v553
        %vm557 = vc.u32 %v551, %v553
        %v558 = vadd.s32 %v554, 1
        %v559 = vsel %vm557, %v558, %v554
        %v560 = vadd.s32 %v555, %v559
        %v561 = vadd.s32 %v560, 536870912
        %v562 = vshrl.u32 %v561, 30
        %v563 = vshll.u32 %v562, 30
        %v564 = vsub.s32 %v560, %v563
        %vm565 = vcmp.lt.s32.totalorder %v564, 0
        %v566 = vsub.s32 0, %v564
        %v567 = vsel %vm565, %v566, %v564
        %v568 = vclz %v567
        %v569 = vsub.s32 %v568, 2
        %vm570 = vcmp.gt.s32.totalorder 0, %v569
        %v571 = vsel %vm570, 0, %v569
        %v572 = vsub.s32 32, %v571
        %v573 = vshll.u32 %v564, %v571
        %v574 = vshrl.u32 %v556, %v572
        %v575 = vor.u32 %v573, %v574
        %v576 = vsub.s32 4294967266, %v571
        %v577 = vadd.s32 %v576, 127
        %v578 = vshll.u32 %v577, 23
        %v579 = vor.u32 4788187, %v578
        %v580 = vand.u32 2147483647, %v579
        %v582 = vcvt.s32.f32 %v575
        %v583 = vmul.f32 %v582, %v580
        %v584 = vxor.u32 %v583, 2147483648
        %v585 = vsel %vm502, %v584, %v583
        %v586 = vsub.s32 4, %v562
        %v587 = vsel %vm502, %v586, %v562
        %v588 = vsel %vm501, %v185, %v585
        %v589 = vsel %vm501, 0, %v587
        %v590 = vcosq.f32.pop %v588
        %v591 = vsinq.f32.pop %v588
        %vm592 = vweird.f32 %v185
        %v593 = vadd.s32 %v589, 3
        %v594 = vand.u32 %v593, 3
        %vm595 = vcmp.lt.s32.totalorder %v594, 2
        %vm596 = vcmp.eq.s32.totalorder %v594, 0
        %v597 = vxor.u32 %v591, 2147483648
        %v598 = vsel %vm596, %v590, %v597
        %vm599 = vcmp.eq.s32.totalorder %v594, 2
        %v600 = vxor.u32 %v590, 2147483648
        %v601 = vsel %vm599, %v600, %v591
        %v602 = vsel %vm595, %v598, %v601
        %v603 = vsel %vm592, nan, %v602
        %v604 = vmul.f32 %v499, 0.03125
        %v605 = vmul.f32 %v603, 0.03125
        %606 = vst [vmem:[%s176] sm:$0xff] %v604
        %607 = vst [vmem:[%s176 + $0x8] sm:$0xff] %v605
        %s608 = sand.u32 %s74, 1
        %s609 = scalar_lea.sflag [#allocation6], %s608
        %s610 = sand.u32 %s74, 1
        %s611 = smul.addr %s610, 16
        %s612 = scalar_lea.vmem [#allocation7], %s611
        %s613 = sand.u32 %s102, 1
        %s614 = scalar_lea.sflag [#allocation9], %s613
        %s615 = sand.u32 %s102, 1
        %s616 = smul.addr %s615, 16
        %s617 = scalar_lea.vmem [#allocation8], %s616
        // Predicated region
        $region29: #{tpu_custom_call.1} parent=23 // pred_check
          %p618 = pneg %p84
        $region30: #{tpu_custom_call.1} parent=23 // pred_check_branch
          %620 = sbr.rel (%p618) target = $region32
        $region31: #{tpu_custom_call.1} parent=23 // pred_region
          %s621 = smul.u32 2, %s30
          %s623 = ssub.s32 256, 256
          %624 = vsyncadd %s609, %s623
          %s625 = smul.addr %s31, 2
          %s626 = sadd.s32 %s621, %s625
          %s627 = smul.addr %s626, 128
          %s628 = scalar_lea.hbm %s2, %s627
          %s629 = sshll.u32 %s612, 4
          %s630 = int_to_ptr.vmem [resolvable:$true] %s629
          %635 = dma.vmem_to_hbm [thread:$0]  %s630, 256, %s628, %s609, 128, 128, 8
        $region32: #{tpu_custom_call.1} parent=23 // pred_fallthru
          _
        // Predicated region
        $region33: #{tpu_custom_call.1} parent=23 // pred_check
          %p636 = pneg %p112
        $region34: #{tpu_custom_call.1} parent=23 // pred_check_branch
          %638 = sbr.rel (%p636) target = $region36
        $region35: #{tpu_custom_call.1} parent=23 // pred_region
          %s639 = smul.u32 2, %s30
          %s641 = ssub.s32 256, 256
          %642 = vsyncadd %s614, %s641
          %s643 = smul.addr %s31, 2
          %s644 = sadd.s32 %s639, %s643
          %s645 = smul.addr %s644, 128
          %s646 = scalar_lea.hbm %s3, %s645
          %s647 = sshll.u32 %s617, 4
          %s648 = int_to_ptr.vmem [resolvable:$true] %s647
          %653 = dma.vmem_to_hbm [thread:$0]  %s648, 256, %s646, %s614, 128, 128, 8
        $region36: #{tpu_custom_call.1} parent=23 // pred_fallthru
          _
      $region24: #{tpu_custom_call.1} parent=5 // pred_fallthru
        _
      %p654 = scmp.le.s32.totalorder 2, %s21
      // Predicated region
      $region37: #{tpu_custom_call.1} parent=5 // pred_check
        %p655 = pneg %p654
      $region38: #{tpu_custom_call.1} parent=5 // pred_check_branch
        %657 = sbr.rel (%p655) target = $region40
      $region39: #{tpu_custom_call.1} parent=5 // pred_region
        %s658 = ssub.s32 %s21, 2
        // Predicated region
        $region41: #{tpu_custom_call.1} parent=39 // pred_check
          %p659 = pneg %p90
        $region42: #{tpu_custom_call.1} parent=39 // pred_check_branch
          %661 = sbr.rel (%p659) target = $region44
        $region43: #{tpu_custom_call.1} parent=39 // pred_region
          %s662 = sand.u32 %s75, 1
          %s663 = scalar_lea.sflag [#allocation6], %s662
          %s664 = sand.u32 %s75, 1
          %s665 = smul.addr %s664, 16
          %s666 = scalar_lea.vmem [#allocation7], %s665
          %667 = dma.done %s663, 256
        $region44: #{tpu_custom_call.1} parent=39 // pred_fallthru
          _
        // Predicated region
        $region45: #{tpu_custom_call.1} parent=39 // pred_check
          %p668 = pneg %p118
        $region46: #{tpu_custom_call.1} parent=39 // pred_check_branch
          %670 = sbr.rel (%p668) target = $region48
        $region47: #{tpu_custom_call.1} parent=39 // pred_region
          %s671 = sand.u32 %s103, 1
          %s672 = scalar_lea.sflag [#allocation9], %s671
          %s673 = sand.u32 %s103, 1
          %s674 = smul.addr %s673, 16
          %s675 = scalar_lea.vmem [#allocation8], %s674
          %676 = dma.done %s672, 256
        $region48: #{tpu_custom_call.1} parent=39 // pred_fallthru
          _
      $region40: #{tpu_custom_call.1} parent=5 // pred_fallthru
        _
    $region6: #{tpu_custom_call.1} parent=1 // loop_footer
      %s25 = sadd.s32 1, %s21
    $region7: #{tpu_custom_call.1} parent=1 // loop_footer_branch
      %20 = sbr.rel target = $region3
    $region8: #{tpu_custom_call.1} parent=1 // loop_exit
      _
    %677 = vsyncpa [#allocation5], 1
    %s678 = scalar_lea.sflag [#allocation5], 1
    %679 = vsyncpa %s678, 1
    %680 = vsyncpa [#allocation6], 1
    %s681 = scalar_lea.sflag [#allocation6], 1
    %682 = vsyncpa %s681, 1
    %683 = vsyncpa [#allocation9], 1
    %s684 = scalar_lea.sflag [#allocation9], 1
    %685 = vsyncpa %s684, 1

</llo_original>
